<compile_context>
chip_gen: v7x
topology: tpu7x:2x2x1
jax: 0.10.0
libtpu: 0.0.40
codegen_flags: <defaults>
</compile_context>

<pallas_src>
import jax
import jax.numpy as jnp
from jax import lax
from jax.experimental import pallas as pl
from jax.experimental.pallas import tpu as pltpu

EPS = 1e-5
LANE = 128


def _round_up(n, m):
    return ((n + m - 1) // m) * m


def _bn_train_fused(x, gamma, beta):
    """Single-pass training-mode BatchNorm: var = E[x^2] - mean^2 (biased)."""
    mean = jnp.mean(x, axis=0, keepdims=True)
    meansq = jnp.mean(x * x, axis=0, keepdims=True)
    var = meansq - mean * mean
    scale = lax.rsqrt(var + EPS) * gamma
    return x * scale + (beta - mean * scale)


# Slab row layout (rows 6..7 are zero padding to keep 8 sublanes):
#   0: gamma1   1: beta1   2: gamma2   3: beta2   4: w3 row   5: b3 (broadcast)
def critic_kernel(sa_ref, w1_ref, w2s_ref, w2a_ref, slab_ref, out_ref):
    sa = sa_ref[0]            # (B, IN_P)  combined [state | action | 0-pad]
    w1 = w1_ref[...]          # (IN_P, H1P)
    w2s = w2s_ref[...]        # (H1P, H2P)
    w2a = w2a_ref[...]        # (IN_P, H2P)
    slab = slab_ref[...]      # (8, SLAB_W)

    h1p = w1.shape[1]
    h2p = w2s.shape[1]

    # fcs1 -> bn1 -> relu   (fcs1 bias dropped: cancels in training-mode BN)
    xs = jnp.dot(sa, w1, preferred_element_type=jnp.float32)
    xs = jnp.maximum(_bn_train_fused(xs, slab[0:1, :h1p], slab[1:2, :h1p]), 0.0)

    # concat(xs, action) @ W2 == xs @ W2_s + sa @ W2_a_padded  (fc2 bias dropped)
    x = (jnp.dot(xs, w2s, preferred_element_type=jnp.float32)
         + jnp.dot(sa, w2a, preferred_element_type=jnp.float32))
    x = jnp.maximum(_bn_train_fused(x, slab[2:3, :h2p], slab[3:4, :h2p]), 0.0)

    # fc3: N=1 output -> VPU multiply + lane reduce instead of an MXU matmul.
    out_ref[0] = (jnp.sum(x * slab[4:5, :h2p], axis=-1, keepdims=True)
                  + slab[5:6, 0:1])


def _pallas_critic(sa, kp):
    """sa: (E, B, IN_P). Weights resident across the E grid steps."""
    E, B, in_p = sa.shape
    h1p = kp["w1"].shape[1]
    h2p = kp["w2s"].shape[1]
    slab_w = kp["slab"].shape[1]
    return pl.pallas_call(
        critic_kernel,
        out_shape=jax.ShapeDtypeStruct((E, B, 1), jnp.float32),
        grid=(E,),
        in_specs=[
            pl.BlockSpec((1, B, in_p), lambda e: (e, 0, 0)),
            pl.BlockSpec((in_p, h1p), lambda e: (0, 0)),   # constant -> DMA once
            pl.BlockSpec((h1p, h2p), lambda e: (0, 0)),    # constant -> DMA once
            pl.BlockSpec((in_p, h2p), lambda e: (0, 0)),   # constant -> DMA once
            pl.BlockSpec((8, slab_w), lambda e: (0, 0)),   # constant -> DMA once
        ],
        out_specs=pl.BlockSpec((1, B, 1), lambda e: (e, 0, 0)),
        compiler_params=pltpu.CompilerParams(
            dimension_semantics=("arbitrary",)),
    )(sa, kp["w1"], kp["w2s"], kp["w2a"], kp["slab"])


def _pack_inputs(states, actions, in_p):
    sa = jnp.concatenate([states, actions], axis=-1)
    pad = in_p - sa.shape[-1]
    if pad:
        sa = jnp.pad(sa, ((0, 0),) * (sa.ndim - 1) + ((0, pad),))
    return sa


def critic_forward_fused(states, actions, kp):
    """E independent evaluations of the same critic in one pallas_call.
    states: (E, B, S), actions: (E, B, A) -> (E, B, 1)."""
    in_p = kp["w1"].shape[0]
    return _pallas_critic(_pack_inputs(states, actions, in_p), kp)


def critic_forward(state, action, kp):
    """Single evaluation, matching the PyTorch module API."""
    return critic_forward_fused(state[None], action[None], kp)[0]


# ----------------------------------------------------------------------------
# Parameter construction (PyTorch-equivalent init) + packing for the kernel.
# ----------------------------------------------------------------------------

def _kaiming_uniform(key, fan_in, fan_out):
    # kaiming_uniform_(mode='fan_in', nonlinearity='relu'):
    # gain = sqrt(2), bound = sqrt(3) * gain / sqrt(fan_in)
    bound = (3.0 ** 0.5) * (2.0 ** 0.5) / (fan_in ** 0.5)
    # stored as [in, out] (transpose of the PyTorch [out, in] layout)
    return jax.random.uniform(key, (fan_in, fan_out), jnp.float32, -bound, bound)


def init_params(key, state_size, action_size, fcs1_units=350, fc2_units=280):
    """Unpadded parameters matching the PyTorch Critic at initialization."""
    k1, k2, k3 = jax.random.split(key, 3)
    w1 = _kaiming_uniform(k1, state_size, fcs1_units)
    w2 = _kaiming_uniform(k2, fcs1_units + action_size, fc2_units)
    w3 = _kaiming_uniform(k3, fc2_units, 1)
    return {
        "w1": w1,
        "b1": jnp.full((1, fcs1_units), 0.1, jnp.float32),
        "g1": jnp.ones((1, fcs1_units), jnp.float32),
        "be1": jnp.zeros((1, fcs1_units), jnp.float32),
        "w2s": w2[:fcs1_units],
        "w2a": w2[fcs1_units:],
        "b2": jnp.full((1, fc2_units), 0.1, jnp.float32),
        "g2": jnp.ones((1, fc2_units), jnp.float32),
        "be2": jnp.zeros((1, fc2_units), jnp.float32),
        "w3": w3,
        "b3": jnp.full((1, 1), 0.1, jnp.float32),
    }


def pack_params(p):
    """Pad to lane-dense tiles and pack small params into one (8, W) slab.

    Invariants (do not break):
      * gamma AND beta padding columns are ZERO, so padded features stay
        exactly 0 through BN/ReLU and contribute nothing via the (zero-padded)
        w3 row / w2s rows.
      * w1 rows [S:IN_P) and w2a rows outside [S:S+A) are zero, so the
        zero-padded lanes of the combined [state|action|0] input are inert.
      * b1/b2 are intentionally dropped: a constant per-feature bias added
        right before training-mode BatchNorm cancels exactly.
    """
    S, H1 = p["w1"].shape
    A = p["w2a"].shape[0]
    H2 = p["w2s"].shape[1]
    in_p = _round_up(S + A, LANE)
    h1p = _round_up(H1, LANE)
    h2p = _round_up(H2, LANE)
    slab_w = max(h1p, h2p)

    def row(v):  # (1, n) -> (1, slab_w), zero-padded
        return jnp.pad(v, ((0, 0), (0, slab_w - v.shape[1])))

    slab = jnp.concatenate([
        row(p["g1"]), row(p["be1"]),
        row(p["g2"]), row(p["be2"]),
        row(p["w3"].T),
        jnp.broadcast_to(p["b3"], (1, slab_w)),
        jnp.zeros((2, slab_w), jnp.float32),
    ], axis=0)

    return {
        "w1": jnp.pad(p["w1"], ((0, in_p - S), (0, h1p - H1))),
        "w2s": jnp.pad(p["w2s"], ((0, h1p - H1), (0, h2p - H2))),
        # action rows placed at [S:S+A) to line up with the combined input.
        "w2a": jnp.pad(p["w2a"], ((S, in_p - S - A), (0, h2p - H2))),
        "slab": slab,
    }


# ----------------------------------------------------------------------------
# Pure-JAX reference (independent BN formulation, mirrors the PyTorch module).
# ----------------------------------------------------------------------------

def _bn_ref(x, gamma, beta):
    mean = jnp.mean(x, axis=0, keepdims=True)
    var = jnp.mean((x - mean) ** 2, axis=0, keepdims=True)  # biased
    return (x - mean) / jnp.sqrt(var + EPS) * gamma + beta


def critic_ref(state, action, p):
    xs = state @ p["w1"] + p["b1"]
    xs = jnp.maximum(_bn_ref(xs, p["g1"], p["be1"]), 0.0)
    x = jnp.concatenate([xs, action], axis=1)
    w2 = jnp.concatenate([p["w2s"], p["w2a"]], axis=0)
    x = x @ w2 + p["b2"]
    x = jnp.maximum(_bn_ref(x, p["g2"], p["be2"]), 0.0)
    return x @ p["w3"] + p["b3"]


if __name__ == "__main__":
    key = jax.random.PRNGKey(0)
    kparam, kstate, kaction = jax.random.split(key, 3)

    batch = 8
    state_size = 32
    action_size = 8
    num_evals = 2  # e.g. Q(s, a_replay) and Q(s, mu(s)) within one DDPG step

    params = init_params(kparam, state_size, action_size)
    kernel_params = pack_params(params)

    states = jax.random.normal(kstate, (num_evals, batch, state_size), jnp.float32)
    actions = jax.random.normal(kaction, (num_evals, batch, action_size), jnp.float32)

    fwd_single = jax.jit(critic_forward)
    fwd_fused = jax.jit(critic_forward_fused)

    # Single-eval path (matches the PyTorch module API).
    out1 = jax.block_until_ready(fwd_single(states[0], actions[0], kernel_params))
    ref1 = critic_ref(states[0], actions[0], params)
    assert out1.shape == (batch, 1), out1.shape
    assert jnp.allclose(out1, ref1, atol=1e-4, rtol=1e-4), (out1, ref1)

    # Fused multi-eval path (weights DMA'd once, resident across grid steps).
    out_f = jax.block_until_ready(fwd_fused(states, actions, kernel_params))
    assert out_f.shape == (num_evals, batch, 1), out_f.shape
    for e in range(num_evals):
        ref_e = critic_ref(states[e], actions[e], params)
        assert jnp.allclose(out_f[e], ref_e, atol=1e-4, rtol=1e-4), (e, out_f[e], ref_e)

    print("KERNEL_OK")
</pallas_src>

<mosaic_0001>
module attributes {stable_mosaic.version = 11 : i64} {
  func.func @critic_kernel(%arg0: i32, %arg1: memref<1x8x128xf32, #tpu.memory_space<vmem>>, %arg2: memref<128x384xf32, #tpu.memory_space<vmem>>, %arg3: memref<384x384xf32, #tpu.memory_space<vmem>>, %arg4: memref<128x384xf32, #tpu.memory_space<vmem>>, %arg5: memref<8x384xf32, #tpu.memory_space<vmem>>, %arg6: memref<1x8x1xf32, #tpu.memory_space<vmem>>) attributes {dimension_semantics = [#tpu.dimension_semantics<arbitrary>], iteration_bounds = array<i64: 1>, scalar_prefetch = 0 : i64, scratch_operands = 0 : i64, tpu.core_type = #tpu.core_type<tc>, window_params = [{transform_indices = @transform_0, window_bounds = array<i64: 1, 8, 128>}, {pipeline_mode = #tpu.pipeline_mode<synchronous>, transform_indices = @transform_1, window_bounds = array<i64: 128, 384>}, {pipeline_mode = #tpu.pipeline_mode<synchronous>, transform_indices = @transform_2, window_bounds = array<i64: 384, 384>}, {pipeline_mode = #tpu.pipeline_mode<synchronous>, transform_indices = @transform_3, window_bounds = array<i64: 128, 384>}, {pipeline_mode = #tpu.pipeline_mode<synchronous>, transform_indices = @transform_4, window_bounds = array<i64: 8, 384>}, {transform_indices = @transform_5, window_bounds = array<i64: 1, 8, 1>}]} {
    %c0 = arith.constant 0 : index
    %c0_0 = arith.constant 0 : index
    %c0_1 = arith.constant 0 : index
    %0 = vector.load %arg1[%c0, %c0_0, %c0_1] : memref<1x8x128xf32, #tpu.memory_space<vmem>>, vector<1x8x128xf32>
    %1 = vector.shape_cast %0 : vector<1x8x128xf32> to vector<8x128xf32>
    %c0_2 = arith.constant 0 : index
    %c0_3 = arith.constant 0 : index
    %2 = vector.load %arg2[%c0_2, %c0_3] : memref<128x384xf32, #tpu.memory_space<vmem>>, vector<128x384xf32>
    %c0_4 = arith.constant 0 : index
    %c0_5 = arith.constant 0 : index
    %3 = vector.load %arg3[%c0_4, %c0_5] : memref<384x384xf32, #tpu.memory_space<vmem>>, vector<384x384xf32>
    %c0_6 = arith.constant 0 : index
    %c0_7 = arith.constant 0 : index
    %4 = vector.load %arg4[%c0_6, %c0_7] : memref<128x384xf32, #tpu.memory_space<vmem>>, vector<128x384xf32>
    %c0_8 = arith.constant 0 : index
    %c0_9 = arith.constant 0 : index
    %5 = vector.load %arg5[%c0_8, %c0_9] : memref<8x384xf32, #tpu.memory_space<vmem>>, vector<8x384xf32>
    %cst = arith.constant dense<0.000000e+00> : vector<8x384xf32>
    %6 = tpu.matmul %1, %2, %cst {dimension_numbers = #tpu.dot_dimension_numbers<[1], [0], [0], [1], [0, 0, 1, 1], [], []>} : vector<8x128xf32>, vector<128x384xf32>, vector<8x384xf32> -> vector<8x384xf32>
    %7 = vector.extract_strided_slice %5 {offsets = [0, 0], sizes = [1, 384], strides = [1, 1]} : vector<8x384xf32> to vector<1x384xf32>
    %8 = vector.extract_strided_slice %5 {offsets = [1, 0], sizes = [1, 384], strides = [1, 1]} : vector<8x384xf32> to vector<1x384xf32>
    %cst_10 = arith.constant dense<0.000000e+00> : vector<384xf32>
    %9 = vector.multi_reduction <add>, %6, %cst_10 [0] : vector<8x384xf32> to vector<384xf32>
    %10 = vector.shape_cast %9 : vector<384xf32> to vector<1x384xf32>
    %cst_11 = arith.constant 8.000000e+00 : f32
    %11 = vector.broadcast %cst_11 : f32 to vector<1x384xf32>
    %12 = arith.divf %10, %11 : vector<1x384xf32>
    %13 = arith.mulf %6, %6 : vector<8x384xf32>
    %cst_12 = arith.constant dense<0.000000e+00> : vector<384xf32>
    %14 = vector.multi_reduction <add>, %13, %cst_12 [0] : vector<8x384xf32> to vector<384xf32>
    %15 = vector.shape_cast %14 : vector<384xf32> to vector<1x384xf32>
    %cst_13 = arith.constant 8.000000e+00 : f32
    %16 = vector.broadcast %cst_13 : f32 to vector<1x384xf32>
    %17 = arith.divf %15, %16 : vector<1x384xf32>
    %18 = arith.mulf %12, %12 : vector<1x384xf32>
    %19 = arith.subf %17, %18 : vector<1x384xf32>
    %cst_14 = arith.constant 9.99999974E-6 : f32
    %20 = vector.broadcast %cst_14 : f32 to vector<1x384xf32>
    %21 = arith.addf %19, %20 : vector<1x384xf32>
    %22 = math.rsqrt %21 : vector<1x384xf32>
    %23 = arith.mulf %22, %7 : vector<1x384xf32>
    %24 = vector.broadcast %23 : vector<1x384xf32> to vector<8x384xf32>
    %25 = arith.mulf %6, %24 : vector<8x384xf32>
    %26 = arith.mulf %12, %23 : vector<1x384xf32>
    %27 = arith.subf %8, %26 : vector<1x384xf32>
    %28 = vector.broadcast %27 : vector<1x384xf32> to vector<8x384xf32>
    %29 = arith.addf %25, %28 : vector<8x384xf32>
    %cst_15 = arith.constant 0.000000e+00 : f32
    %30 = vector.broadcast %cst_15 : f32 to vector<8x384xf32>
    %31 = arith.maximumf %29, %30 : vector<8x384xf32>
    %cst_16 = arith.constant dense<0.000000e+00> : vector<8x384xf32>
    %32 = tpu.matmul %31, %3, %cst_16 {dimension_numbers = #tpu.dot_dimension_numbers<[1], [0], [0], [1], [0, 0, 1, 1], [], []>} : vector<8x384xf32>, vector<384x384xf32>, vector<8x384xf32> -> vector<8x384xf32>
    %cst_17 = arith.constant dense<0.000000e+00> : vector<8x384xf32>
    %33 = tpu.matmul %1, %4, %cst_17 {dimension_numbers = #tpu.dot_dimension_numbers<[1], [0], [0], [1], [0, 0, 1, 1], [], []>} : vector<8x128xf32>, vector<128x384xf32>, vector<8x384xf32> -> vector<8x384xf32>
    %34 = arith.addf %32, %33 : vector<8x384xf32>
    %35 = vector.extract_strided_slice %5 {offsets = [2, 0], sizes = [1, 384], strides = [1, 1]} : vector<8x384xf32> to vector<1x384xf32>
    %36 = vector.extract_strided_slice %5 {offsets = [3, 0], sizes = [1, 384], strides = [1, 1]} : vector<8x384xf32> to vector<1x384xf32>
    %cst_18 = arith.constant dense<0.000000e+00> : vector<384xf32>
    %37 = vector.multi_reduction <add>, %34, %cst_18 [0] : vector<8x384xf32> to vector<384xf32>
    %38 = vector.shape_cast %37 : vector<384xf32> to vector<1x384xf32>
    %cst_19 = arith.constant 8.000000e+00 : f32
    %39 = vector.broadcast %cst_19 : f32 to vector<1x384xf32>
    %40 = arith.divf %38, %39 : vector<1x384xf32>
    %41 = arith.mulf %34, %34 : vector<8x384xf32>
    %cst_20 = arith.constant dense<0.000000e+00> : vector<384xf32>
    %42 = vector.multi_reduction <add>, %41, %cst_20 [0] : vector<8x384xf32> to vector<384xf32>
    %43 = vector.shape_cast %42 : vector<384xf32> to vector<1x384xf32>
    %cst_21 = arith.constant 8.000000e+00 : f32
    %44 = vector.broadcast %cst_21 : f32 to vector<1x384xf32>
    %45 = arith.divf %43, %44 : vector<1x384xf32>
    %46 = arith.mulf %40, %40 : vector<1x384xf32>
    %47 = arith.subf %45, %46 : vector<1x384xf32>
    %cst_22 = arith.constant 9.99999974E-6 : f32
    %48 = vector.broadcast %cst_22 : f32 to vector<1x384xf32>
    %49 = arith.addf %47, %48 : vector<1x384xf32>
    %50 = math.rsqrt %49 : vector<1x384xf32>
    %51 = arith.mulf %50, %35 : vector<1x384xf32>
    %52 = vector.broadcast %51 : vector<1x384xf32> to vector<8x384xf32>
    %53 = arith.mulf %34, %52 : vector<8x384xf32>
    %54 = arith.mulf %40, %51 : vector<1x384xf32>
    %55 = arith.subf %36, %54 : vector<1x384xf32>
    %56 = vector.broadcast %55 : vector<1x384xf32> to vector<8x384xf32>
    %57 = arith.addf %53, %56 : vector<8x384xf32>
    %cst_23 = arith.constant 0.000000e+00 : f32
    %58 = vector.broadcast %cst_23 : f32 to vector<8x384xf32>
    %59 = arith.maximumf %57, %58 : vector<8x384xf32>
    %60 = vector.extract_strided_slice %5 {offsets = [4, 0], sizes = [1, 384], strides = [1, 1]} : vector<8x384xf32> to vector<1x384xf32>
    %61 = vector.broadcast %60 : vector<1x384xf32> to vector<8x384xf32>
    %62 = arith.mulf %59, %61 : vector<8x384xf32>
    %cst_24 = arith.constant dense<0.000000e+00> : vector<8xf32>
    %63 = vector.multi_reduction <add>, %62, %cst_24 [1] : vector<8x384xf32> to vector<8xf32>
    %64 = vector.shape_cast %63 : vector<8xf32> to vector<8x1xf32>
    %65 = vector.extract_strided_slice %5 {offsets = [5, 0], sizes = [1, 1], strides = [1, 1]} : vector<8x384xf32> to vector<1x1xf32>
    %66 = vector.broadcast %65 : vector<1x1xf32> to vector<8x1xf32>
    %67 = arith.addf %64, %66 : vector<8x1xf32>
    %c0_25 = arith.constant 0 : index
    %c0_26 = arith.constant 0 : index
    %c0_27 = arith.constant 0 : index
    %68 = vector.load %arg6[%c0_25, %c0_26, %c0_27] : memref<1x8x1xf32, #tpu.memory_space<vmem>>, vector<1x8x1xf32>
    %69 = vector.shape_cast %68 : vector<1x8x1xf32> to vector<8x1xf32>
    %70 = vector.shape_cast %67 : vector<8x1xf32> to vector<1x8x1xf32>
    tpu.vector_store %arg6[%c0_25, %c0_26, %c0_27], %70 {strides = array<i32>} : memref<1x8x1xf32, #tpu.memory_space<vmem>>, vector<1x8x1xf32>,
    return
  }
  func.func @transform_0(%arg0: i32) -> (i32, i32, i32) {
    %c0_i32 = arith.constant 0 : i32
    %c0_i32_0 = arith.constant 0 : i32
    %c0_i32_1 = arith.constant 0 : i32
    return %arg0, %c0_i32, %c0_i32_0 : i32, i32, i32
  }
  func.func @transform_1(%arg0: i32) -> (i32, i32) {
    %c0_i32 = arith.constant 0 : i32
    %c0_i32_0 = arith.constant 0 : i32
    %c0_i32_1 = arith.constant 0 : i32
    return %c0_i32, %c0_i32_0 : i32, i32
  }
  func.func @transform_2(%arg0: i32) -> (i32, i32) {
    %c0_i32 = arith.constant 0 : i32
    %c0_i32_0 = arith.constant 0 : i32
    %c0_i32_1 = arith.constant 0 : i32
    return %c0_i32, %c0_i32_0 : i32, i32
  }
  func.func @transform_3(%arg0: i32) -> (i32, i32) {
    %c0_i32 = arith.constant 0 : i32
    %c0_i32_0 = arith.constant 0 : i32
    %c0_i32_1 = arith.constant 0 : i32
    return %c0_i32, %c0_i32_0 : i32, i32
  }
  func.func @transform_4(%arg0: i32) -> (i32, i32) {
    %c0_i32 = arith.constant 0 : i32
    %c0_i32_0 = arith.constant 0 : i32
    %c0_i32_1 = arith.constant 0 : i32
    return %c0_i32, %c0_i32_0 : i32, i32
  }
  func.func @transform_5(%arg0: i32) -> (i32, i32, i32) {
    %c0_i32 = arith.constant 0 : i32
    %c0_i32_0 = arith.constant 0 : i32
    %c0_i32_1 = arith.constant 0 : i32
    return %arg0, %c0_i32, %c0_i32_0 : i32, i32, i32
  }
}

</mosaic_0001>

<llo_original>
// kernel: critic_forward.1
$region0: #{critic_forward.1}
  #allocation0 [shape = 'u32[]', space=smem, size = 0x4, offset = 0x4, fixed_abs, tag = 'smem constant byte address 0x4 - core index']
  #allocation1 [shape = 'u32[144,128]{1,0:T(1,128)}', space=vmem, size = 0x12000, scoped, tag = 'internal scratch']
  %s0 = inlined_call_operand.vmem [shape: f32[1,8,128], index: 0, kind: input, shape index: {}]
  %s1 = inlined_call_operand.hbm [shape: f32[128,384], index: 1, kind: input, shape index: {}]
  %s2 = inlined_call_operand.hbm [shape: f32[384,384], index: 2, kind: input, shape index: {}]
  %s3 = inlined_call_operand.hbm [shape: f32[128,384], index: 3, kind: input, shape index: {}]
  %s4 = inlined_call_operand.vmem [shape: f32[8,384], index: 4, kind: input, shape index: {}]
  %s5 = inlined_call_operand.vmem [shape: f32[1,8,1], index: 5, kind: output, shape index: {}]
  %s6 = sld [smem:[#allocation0]]
  $region42: #{critic_forward.1} parent=0
    _
  %s8 = ssub.s32 1, %s6
  %s9 = scalar_select 0, %s8, %s6
  $region1: #{critic_forward.1} parent=0
    #allocation2 [shape = 'u8[196608]{0}', space=vmem, size = 0x30000, scoped, tag = 'input window, operand 1, single buffered']
    #allocation3 [shape = 's32[1]{0}', space=sflag, size = 0x4, scoped, tag = 'scoped memory for critic_forward.1']
    #allocation4 [shape = 'u8[589824]{0}', space=vmem, size = 0x90000, scoped, tag = 'input window, operand 2, single buffered']
    #allocation5 [shape = 's32[1]{0}', space=sflag, size = 0x4, scoped, tag = 'scoped memory for critic_forward.1']
    #allocation6 [shape = 'u8[196608]{0}', space=vmem, size = 0x30000, scoped, tag = 'input window, operand 3, single buffered']
    %10 = vsyncpa [#allocation3], 0
    %11 = vsyncpa [#allocation5], 0
    // Predicated region
    $region2: #{critic_forward.1} parent=1 // pred_check
      _
    $region3: #{critic_forward.1} parent=1 // pred_check_branch
      %13 = sbr.rel (0) target = $region5
    $region4: #{critic_forward.1} parent=1 // pred_region
      _
    $region5: #{critic_forward.1} parent=1 // pred_fallthru
      _
    // Predicated region
    $region6: #{critic_forward.1} parent=1 // pred_check
      _
    $region7: #{critic_forward.1} parent=1 // pred_check_branch
      %15 = sbr.rel (0) target = $region9
    $region8: #{critic_forward.1} parent=1 // pred_region
      %s17 = ssub.s32 6144, 6144
      %18 = vsyncadd [#allocation3], %s17
      %s19 = sshll.u32 [#allocation2], 4
      %s20 = int_to_ptr.vmem [resolvable:$true] %s19
      %25 = dma.hbm_to_vmem [thread:$0]  %s1, 6144, %s20, [#allocation3], 384, 384, 24
    $region9: #{critic_forward.1} parent=1 // pred_fallthru
      _
    // Predicated region
    $region10: #{critic_forward.1} parent=1 // pred_check
      _
    $region11: #{critic_forward.1} parent=1 // pred_check_branch
      %27 = sbr.rel (0) target = $region13
    $region12: #{critic_forward.1} parent=1 // pred_region
      %s29 = ssub.s32 18432, 18432
      %30 = vsyncadd [#allocation5], %s29
      %s31 = sshll.u32 [#allocation4], 4
      %s32 = int_to_ptr.vmem [resolvable:$true] %s31
      %37 = dma.hbm_to_vmem [thread:$0]  %s2, 18432, %s32, [#allocation5], 384, 384, 24
    $region13: #{critic_forward.1} parent=1 // pred_fallthru
      _
    // Predicated region
    $region14: #{critic_forward.1} parent=1 // pred_check
      _
    $region15: #{critic_forward.1} parent=1 // pred_check_branch
      %39 = sbr.rel (0) target = $region17
    $region16: #{critic_forward.1} parent=1 // pred_region
      %s41 = ssub.s32 6144, 6144
      %42 = vsyncadd [#allocation5], %s41
      %s43 = sshll.u32 [#allocation6], 4
      %s44 = int_to_ptr.vmem [resolvable:$true] %s43
      %49 = dma.hbm_to_vmem [thread:$0]  %s3, 6144, %s44, [#allocation5], 384, 384, 24
    $region17: #{critic_forward.1} parent=1 // pred_fallthru
      _
    // Predicated region
    $region18: #{critic_forward.1} parent=1 // pred_check
      _
    $region19: #{critic_forward.1} parent=1 // pred_check_branch
      %51 = sbr.rel (0) target = $region21
    $region20: #{critic_forward.1} parent=1 // pred_region
      _
    $region21: #{critic_forward.1} parent=1 // pred_fallthru
      _
    // Predicated region
    $region22: #{critic_forward.1} parent=1 // pred_check
      _
    $region23: #{critic_forward.1} parent=1 // pred_check_branch
      %53 = sbr.rel (0) target = $region25
    $region24: #{critic_forward.1} parent=1 // pred_region
      %54 = dma.done [#allocation3], 6144
    $region25: #{critic_forward.1} parent=1 // pred_fallthru
      _
    // Predicated region
    $region26: #{critic_forward.1} parent=1 // pred_check
      _
    $region27: #{critic_forward.1} parent=1 // pred_check_branch
      %56 = sbr.rel (0) target = $region29
    $region28: #{critic_forward.1} parent=1 // pred_region
      %57 = dma.done [#allocation5], 18432
    $region29: #{critic_forward.1} parent=1 // pred_fallthru
      _
    // Predicated region
    $region30: #{critic_forward.1} parent=1 // pred_check
      _
    $region31: #{critic_forward.1} parent=1 // pred_check_branch
      %59 = sbr.rel (0) target = $region33
    $region32: #{critic_forward.1} parent=1 // pred_region
      %60 = dma.done [#allocation5], 6144
    $region33: #{critic_forward.1} parent=1 // pred_fallthru
      _
    %v61 = vld [vmem:[%s0] sm:$0xff]
    %v62 = vld [vmem:[#allocation2] sm:$0xff]
    %v63 = vld [vmem:[#allocation2 + $0x8] sm:$0xff]
    %v64 = vld [vmem:[#allocation2 + $0x10] sm:$0xff]
    %v65 = vld [vmem:[#allocation2 + $0x18] sm:$0xff]
    %v66 = vld [vmem:[#allocation2 + $0x20] sm:$0xff]
    %v67 = vld [vmem:[#allocation2 + $0x28] sm:$0xff]
    %v68 = vld [vmem:[#allocation2 + $0x30] sm:$0xff]
    %v69 = vld [vmem:[#allocation2 + $0x38] sm:$0xff]
    %v70 = vld [vmem:[#allocation2 + $0x40] sm:$0xff]
    %v71 = vld [vmem:[#allocation2 + $0x48] sm:$0xff]
    %v72 = vld [vmem:[#allocation2 + $0x50] sm:$0xff]
    %v73 = vld [vmem:[#allocation2 + $0x58] sm:$0xff]
    %v74 = vld [vmem:[#allocation2 + $0x60] sm:$0xff]
    %v75 = vld [vmem:[#allocation2 + $0x68] sm:$0xff]
    %v76 = vld [vmem:[#allocation2 + $0x70] sm:$0xff]
    %v77 = vld [vmem:[#allocation2 + $0x78] sm:$0xff]
    %v78 = vld [vmem:[#allocation2 + $0x80] sm:$0xff]
    %v79 = vld [vmem:[#allocation2 + $0x88] sm:$0xff]
    %v80 = vld [vmem:[#allocation2 + $0x90] sm:$0xff]
    %v81 = vld [vmem:[#allocation2 + $0x98] sm:$0xff]
    %v82 = vld [vmem:[#allocation2 + $0xa0] sm:$0xff]
    %v83 = vld [vmem:[#allocation2 + $0xa8] sm:$0xff]
    %v84 = vld [vmem:[#allocation2 + $0xb0] sm:$0xff]
    %v85 = vld [vmem:[#allocation2 + $0xb8] sm:$0xff]
    %v86 = vld [vmem:[#allocation2 + $0xc0] sm:$0xff]
    %v87 = vld [vmem:[#allocation2 + $0xc8] sm:$0xff]
    %v88 = vld [vmem:[#allocation2 + $0xd0] sm:$0xff]
    %v89 = vld [vmem:[#allocation2 + $0xd8] sm:$0xff]
    %v90 = vld [vmem:[#allocation2 + $0xe0] sm:$0xff]
    %v91 = vld [vmem:[#allocation2 + $0xe8] sm:$0xff]
    %v92 = vld [vmem:[#allocation2 + $0xf0] sm:$0xff]
    %v93 = vld [vmem:[#allocation2 + $0xf8] sm:$0xff]
    %v94 = vld [vmem:[#allocation2 + $0x100] sm:$0xff]
    %v95 = vld [vmem:[#allocation2 + $0x108] sm:$0xff]
    %v96 = vld [vmem:[#allocation2 + $0x110] sm:$0xff]
    %v97 = vld [vmem:[#allocation2 + $0x118] sm:$0xff]
    %v98 = vld [vmem:[#allocation2 + $0x120] sm:$0xff]
    %v99 = vld [vmem:[#allocation2 + $0x128] sm:$0xff]
    %v100 = vld [vmem:[#allocation2 + $0x130] sm:$0xff]
    %v101 = vld [vmem:[#allocation2 + $0x138] sm:$0xff]
    %v102 = vld [vmem:[#allocation2 + $0x140] sm:$0xff]
    %v103 = vld [vmem:[#allocation2 + $0x148] sm:$0xff]
    %v104 = vld [vmem:[#allocation2 + $0x150] sm:$0xff]
    %v105 = vld [vmem:[#allocation2 + $0x158] sm:$0xff]
    %v106 = vld [vmem:[#allocation2 + $0x160] sm:$0xff]
    %v107 = vld [vmem:[#allocation2 + $0x168] sm:$0xff]
    %v108 = vld [vmem:[#allocation2 + $0x170] sm:$0xff]
    %v109 = vld [vmem:[#allocation2 + $0x178] sm:$0xff]
    %v110 = vld [vmem:[#allocation4] sm:$0xff]
    %v111 = vld [vmem:[#allocation4 + $0x8] sm:$0xff]
    %v112 = vld [vmem:[#allocation4 + $0x10] sm:$0xff]
    %v113 = vld [vmem:[#allocation4 + $0x18] sm:$0xff]
    %v114 = vld [vmem:[#allocation4 + $0x20] sm:$0xff]
    %v115 = vld [vmem:[#allocation4 + $0x28] sm:$0xff]
    %v116 = vld [vmem:[#allocation4 + $0x30] sm:$0xff]
    %v117 = vld [vmem:[#allocation4 + $0x38] sm:$0xff]
    %v118 = vld [vmem:[#allocation4 + $0x40] sm:$0xff]
    %v119 = vld [vmem:[#allocation4 + $0x48] sm:$0xff]
    %v120 = vld [vmem:[#allocation4 + $0x50] sm:$0xff]
    %v121 = vld [vmem:[#allocation4 + $0x58] sm:$0xff]
    %v122 = vld [vmem:[#allocation4 + $0x60] sm:$0xff]
    %v123 = vld [vmem:[#allocation4 + $0x68] sm:$0xff]
    %v124 = vld [vmem:[#allocation4 + $0x70] sm:$0xff]
    %v125 = vld [vmem:[#allocation4 + $0x78] sm:$0xff]
    %v126 = vld [vmem:[#allocation4 + $0x80] sm:$0xff]
    %v127 = vld [vmem:[#allocation4 + $0x88] sm:$0xff]
    %v128 = vld [vmem:[#allocation4 + $0x90] sm:$0xff]
    %v129 = vld [vmem:[#allocation4 + $0x98] sm:$0xff]
    %v130 = vld [vmem:[#allocation4 + $0xa0] sm:$0xff]
    %v131 = vld [vmem:[#allocation4 + $0xa8] sm:$0xff]
    %v132 = vld [vmem:[#allocation4 + $0xb0] sm:$0xff]
    %v133 = vld [vmem:[#allocation4 + $0xb8] sm:$0xff]
    %v134 = vld [vmem:[#allocation4 + $0xc0] sm:$0xff]
    %v135 = vld [vmem:[#allocation4 + $0xc8] sm:$0xff]
    %v136 = vld [vmem:[#allocation4 + $0xd0] sm:$0xff]
    %v137 = vld [vmem:[#allocation4 + $0xd8] sm:$0xff]
    %v138 = vld [vmem:[#allocation4 + $0xe0] sm:$0xff]
    %v139 = vld [vmem:[#allocation4 + $0xe8] sm:$0xff]
    %v140 = vld [vmem:[#allocation4 + $0xf0] sm:$0xff]
    %v141 = vld [vmem:[#allocation4 + $0xf8] sm:$0xff]
    %v142 = vld [vmem:[#allocation4 + $0x100] sm:$0xff]
    %v143 = vld [vmem:[#allocation4 + $0x108] sm:$0xff]
    %v144 = vld [vmem:[#allocation4 + $0x110] sm:$0xff]
    %v145 = vld [vmem:[#allocation4 + $0x118] sm:$0xff]
    %v146 = vld [vmem:[#allocation4 + $0x120] sm:$0xff]
    %v147 = vld [vmem:[#allocation4 + $0x128] sm:$0xff]
    %v148 = vld [vmem:[#allocation4 + $0x130] sm:$0xff]
    %v149 = vld [vmem:[#allocation4 + $0x138] sm:$0xff]
    %v150 = vld [vmem:[#allocation4 + $0x140] sm:$0xff]
    %v151 = vld [vmem:[#allocation4 + $0x148] sm:$0xff]
    %v152 = vld [vmem:[#allocation4 + $0x150] sm:$0xff]
    %v153 = vld [vmem:[#allocation4 + $0x158] sm:$0xff]
    %v154 = vld [vmem:[#allocation4 + $0x160] sm:$0xff]
    %v155 = vld [vmem:[#allocation4 + $0x168] sm:$0xff]
    %v156 = vld [vmem:[#allocation4 + $0x170] sm:$0xff]
    %v157 = vld [vmem:[#allocation4 + $0x178] sm:$0xff]
    %v158 = vld [vmem:[#allocation4 + $0x180] sm:$0xff]
    %v159 = vld [vmem:[#allocation4 + $0x188] sm:$0xff]
    %v160 = vld [vmem:[#allocation4 + $0x190] sm:$0xff]
    %v161 = vld [vmem:[#allocation4 + $0x198] sm:$0xff]
    %v162 = vld [vmem:[#allocation4 + $0x1a0] sm:$0xff]
    %v163 = vld [vmem:[#allocation4 + $0x1a8] sm:$0xff]
    %v164 = vld [vmem:[#allocation4 + $0x1b0] sm:$0xff]
    %v165 = vld [vmem:[#allocation4 + $0x1b8] sm:$0xff]
    %v166 = vld [vmem:[#allocation4 + $0x1c0] sm:$0xff]
    %v167 = vld [vmem:[#allocation4 + $0x1c8] sm:$0xff]
    %v168 = vld [vmem:[#allocation4 + $0x1d0] sm:$0xff]
    %v169 = vld [vmem:[#allocation4 + $0x1d8] sm:$0xff]
    %v170 = vld [vmem:[#allocation4 + $0x1e0] sm:$0xff]
    %v171 = vld [vmem:[#allocation4 + $0x1e8] sm:$0xff]
    %v172 = vld [vmem:[#allocation4 + $0x1f0] sm:$0xff]
    %v173 = vld [vmem:[#allocation4 + $0x1f8] sm:$0xff]
    %v174 = vld [vmem:[#allocation4 + $0x200] sm:$0xff]
    %v175 = vld [vmem:[#allocation4 + $0x208] sm:$0xff]
    %v176 = vld [vmem:[#allocation4 + $0x210] sm:$0xff]
    %v177 = vld [vmem:[#allocation4 + $0x218] sm:$0xff]
    %v178 = vld [vmem:[#allocation4 + $0x220] sm:$0xff]
    %v179 = vld [vmem:[#allocation4 + $0x228] sm:$0xff]
    %v180 = vld [vmem:[#allocation4 + $0x230] sm:$0xff]
    %v181 = vld [vmem:[#allocation4 + $0x238] sm:$0xff]
    %v182 = vld [vmem:[#allocation4 + $0x240] sm:$0xff]
    %v183 = vld [vmem:[#allocation4 + $0x248] sm:$0xff]
    %v184 = vld [vmem:[#allocation4 + $0x250] sm:$0xff]
    %v185 = vld [vmem:[#allocation4 + $0x258] sm:$0xff]
    %v186 = vld [vmem:[#allocation4 + $0x260] sm:$0xff]
    %v187 = vld [vmem:[#allocation4 + $0x268] sm:$0xff]
    %v188 = vld [vmem:[#allocation4 + $0x270] sm:$0xff]
    %v189 = vld [vmem:[#allocation4 + $0x278] sm:$0xff]
    %v190 = vld [vmem:[#allocation4 + $0x280] sm:$0xff]
    %v191 = vld [vmem:[#allocation4 + $0x288] sm:$0xff]
    %v192 = vld [vmem:[#allocation4 + $0x290] sm:$0xff]
    %v193 = vld [vmem:[#allocation4 + $0x298] sm:$0xff]
    %v194 = vld [vmem:[#allocation4 + $0x2a0] sm:$0xff]
    %v195 = vld [vmem:[#allocation4 + $0x2a8] sm:$0xff]
    %v196 = vld [vmem:[#allocation4 + $0x2b0] sm:$0xff]
    %v197 = vld [vmem:[#allocation4 + $0x2b8] sm:$0xff]
    %v198 = vld [vmem:[#allocation4 + $0x2c0] sm:$0xff]
    %v199 = vld [vmem:[#allocation4 + $0x2c8] sm:$0xff]
    %v200 = vld [vmem:[#allocation4 + $0x2d0] sm:$0xff]
    %v201 = vld [vmem:[#allocation4 + $0x2d8] sm:$0xff]
    %v202 = vld [vmem:[#allocation4 + $0x2e0] sm:$0xff]
    %v203 = vld [vmem:[#allocation4 + $0x2e8] sm:$0xff]
    %v204 = vld [vmem:[#allocation4 + $0x2f0] sm:$0xff]
    %v205 = vld [vmem:[#allocation4 + $0x2f8] sm:$0xff]
    %v206 = vld [vmem:[#allocation4 + $0x300] sm:$0xff]
    %v207 = vld [vmem:[#allocation4 + $0x308] sm:$0xff]
    %v208 = vld [vmem:[#allocation4 + $0x310] sm:$0xff]
    %v209 = vld [vmem:[#allocation4 + $0x318] sm:$0xff]
    %v210 = vld [vmem:[#allocation4 + $0x320] sm:$0xff]
    %v211 = vld [vmem:[#allocation4 + $0x328] sm:$0xff]
    %v212 = vld [vmem:[#allocation4 + $0x330] sm:$0xff]
    %v213 = vld [vmem:[#allocation4 + $0x338] sm:$0xff]
    %v214 = vld [vmem:[#allocation4 + $0x340] sm:$0xff]
    %v215 = vld [vmem:[#allocation4 + $0x348] sm:$0xff]
    %v216 = vld [vmem:[#allocation4 + $0x350] sm:$0xff]
    %v217 = vld [vmem:[#allocation4 + $0x358] sm:$0xff]
    %v218 = vld [vmem:[#allocation4 + $0x360] sm:$0xff]
    %v219 = vld [vmem:[#allocation4 + $0x368] sm:$0xff]
    %v220 = vld [vmem:[#allocation4 + $0x370] sm:$0xff]
    %v221 = vld [vmem:[#allocation4 + $0x378] sm:$0xff]
    %v222 = vld [vmem:[#allocation4 + $0x380] sm:$0xff]
    %v223 = vld [vmem:[#allocation4 + $0x388] sm:$0xff]
    %v224 = vld [vmem:[#allocation4 + $0x390] sm:$0xff]
    %v225 = vld [vmem:[#allocation4 + $0x398] sm:$0xff]
    %v226 = vld [vmem:[#allocation4 + $0x3a0] sm:$0xff]
    %v227 = vld [vmem:[#allocation4 + $0x3a8] sm:$0xff]
    %v228 = vld [vmem:[#allocation4 + $0x3b0] sm:$0xff]
    %v229 = vld [vmem:[#allocation4 + $0x3b8] sm:$0xff]
    %v230 = vld [vmem:[#allocation4 + $0x3c0] sm:$0xff]
    %v231 = vld [vmem:[#allocation4 + $0x3c8] sm:$0xff]
    %v232 = vld [vmem:[#allocation4 + $0x3d0] sm:$0xff]
    %v233 = vld [vmem:[#allocation4 + $0x3d8] sm:$0xff]
    %v234 = vld [vmem:[#allocation4 + $0x3e0] sm:$0xff]
    %v235 = vld [vmem:[#allocation4 + $0x3e8] sm:$0xff]
    %v236 = vld [vmem:[#allocation4 + $0x3f0] sm:$0xff]
    %v237 = vld [vmem:[#allocation4 + $0x3f8] sm:$0xff]
    %v238 = vld [vmem:[#allocation4 + $0x400] sm:$0xff]
    %v239 = vld [vmem:[#allocation4 + $0x408] sm:$0xff]
    %v240 = vld [vmem:[#allocation4 + $0x410] sm:$0xff]
    %v241 = vld [vmem:[#allocation4 + $0x418] sm:$0xff]
    %v242 = vld [vmem:[#allocation4 + $0x420] sm:$0xff]
    %v243 = vld [vmem:[#allocation4 + $0x428] sm:$0xff]
    %v244 = vld [vmem:[#allocation4 + $0x430] sm:$0xff]
    %v245 = vld [vmem:[#allocation4 + $0x438] sm:$0xff]
    %v246 = vld [vmem:[#allocation4 + $0x440] sm:$0xff]
    %v247 = vld [vmem:[#allocation4 + $0x448] sm:$0xff]
    %v248 = vld [vmem:[#allocation4 + $0x450] sm:$0xff]
    %v249 = vld [vmem:[#allocation4 + $0x458] sm:$0xff]
    %v250 = vld [vmem:[#allocation4 + $0x460] sm:$0xff]
    %v251 = vld [vmem:[#allocation4 + $0x468] sm:$0xff]
    %v252 = vld [vmem:[#allocation4 + $0x470] sm:$0xff]
    %v253 = vld [vmem:[#allocation4 + $0x478] sm:$0xff]
    %v254 = vld [vmem:[#allocation6] sm:$0xff]
    %v255 = vld [vmem:[#allocation6 + $0x8] sm:$0xff]
    %v256 = vld [vmem:[#allocation6 + $0x10] sm:$0xff]
    %v257 = vld [vmem:[#allocation6 + $0x18] sm:$0xff]
    %v258 = vld [vmem:[#allocation6 + $0x20] sm:$0xff]
    %v259 = vld [vmem:[#allocation6 + $0x28] sm:$0xff]
    %v260 = vld [vmem:[#allocation6 + $0x30] sm:$0xff]
    %v261 = vld [vmem:[#allocation6 + $0x38] sm:$0xff]
    %v262 = vld [vmem:[#allocation6 + $0x40] sm:$0xff]
    %v263 = vld [vmem:[#allocation6 + $0x48] sm:$0xff]
    %v264 = vld [vmem:[#allocation6 + $0x50] sm:$0xff]
    %v265 = vld [vmem:[#allocation6 + $0x58] sm:$0xff]
    %v266 = vld [vmem:[#allocation6 + $0x60] sm:$0xff]
    %v267 = vld [vmem:[#allocation6 + $0x68] sm:$0xff]
    %v268 = vld [vmem:[#allocation6 + $0x70] sm:$0xff]
    %v269 = vld [vmem:[#allocation6 + $0x78] sm:$0xff]
    %v270 = vld [vmem:[#allocation6 + $0x80] sm:$0xff]
    %v271 = vld [vmem:[#allocation6 + $0x88] sm:$0xff]
    %v272 = vld [vmem:[#allocation6 + $0x90] sm:$0xff]
    %v273 = vld [vmem:[#allocation6 + $0x98] sm:$0xff]
    %v274 = vld [vmem:[#allocation6 + $0xa0] sm:$0xff]
    %v275 = vld [vmem:[#allocation6 + $0xa8] sm:$0xff]
    %v276 = vld [vmem:[#allocation6 + $0xb0] sm:$0xff]
    %v277 = vld [vmem:[#allocation6 + $0xb8] sm:$0xff]
    %v278 = vld [vmem:[#allocation6 + $0xc0] sm:$0xff]
    %v279 = vld [vmem:[#allocation6 + $0xc8] sm:$0xff]
    %v280 = vld [vmem:[#allocation6 + $0xd0] sm:$0xff]
    %v281 = vld [vmem:[#allocation6 + $0xd8] sm:$0xff]
    %v282 = vld [vmem:[#allocation6 + $0xe0] sm:$0xff]
    %v283 = vld [vmem:[#allocation6 + $0xe8] sm:$0xff]
    %v284 = vld [vmem:[#allocation6 + $0xf0] sm:$0xff]
    %v285 = vld [vmem:[#allocation6 + $0xf8] sm:$0xff]
    %v286 = vld [vmem:[#allocation6 + $0x100] sm:$0xff]
    %v287 = vld [vmem:[#allocation6 + $0x108] sm:$0xff]
    %v288 = vld [vmem:[#allocation6 + $0x110] sm:$0xff]
    %v289 = vld [vmem:[#allocation6 + $0x118] sm:$0xff]
    %v290 = vld [vmem:[#allocation6 + $0x120] sm:$0xff]
    %v291 = vld [vmem:[#allocation6 + $0x128] sm:$0xff]
    %v292 = vld [vmem:[#allocation6 + $0x130] sm:$0xff]
    %v293 = vld [vmem:[#allocation6 + $0x138] sm:$0xff]
    %v294 = vld [vmem:[#allocation6 + $0x140] sm:$0xff]
    %v295 = vld [vmem:[#allocation6 + $0x148] sm:$0xff]
    %v296 = vld [vmem:[#allocation6 + $0x150] sm:$0xff]
    %v297 = vld [vmem:[#allocation6 + $0x158] sm:$0xff]
    %v298 = vld [vmem:[#allocation6 + $0x160] sm:$0xff]
    %v299 = vld [vmem:[#allocation6 + $0x168] sm:$0xff]
    %v300 = vld [vmem:[#allocation6 + $0x170] sm:$0xff]
    %v301 = vld [vmem:[#allocation6 + $0x178] sm:$0xff]
    %v302 = vld [vmem:[%s4] sm:$0xff]
    %v303 = vld [vmem:[%s4 + $0x8] sm:$0xff]
    %v304 = vld [vmem:[%s4 + $0x10] sm:$0xff]
    %305 = vmatprep.subr.mxu0 %v63
    %306 = vmatpush1.msra.mxu0 %v62
    %307 = vmatprep.subr.mxu0 %v66
    %308 = vmatpush1.msra.mxu0 %v65
    %309 = vmatprep.subr.mxu0 %v69
    %310 = vmatpush1.msra.mxu0 %v68
    %311 = vmatprep.subr.mxu0 %v72
    %312 = vmatpush1.msra.mxu0 %v71
    %313 = vmatprep.subr.mxu0 %v75
    %314 = vmatpush1.msra.mxu0 %v74
    %315 = vmatprep.subr.mxu0 %v78
    %316 = vmatpush1.msra.mxu0 %v77
    %317 = vmatprep.subr.mxu0 %v81
    %318 = vmatpush1.msra.mxu0 %v80
    %319 = vmatprep.subr.mxu0 %v84
    %320 = vmatpush1.msra.mxu0 %v83
    %321 = vmatprep.subr.mxu0 %v87
    %322 = vmatpush1.msra.mxu0 %v86
    %323 = vmatprep.subr.mxu0 %v90
    %324 = vmatpush1.msra.mxu0 %v89
    %325 = vmatprep.subr.mxu0 %v93
    %326 = vmatpush1.msra.mxu0 %v92
    %327 = vmatprep.subr.mxu0 %v96
    %328 = vmatpush1.msra.mxu0 %v95
    %329 = vmatprep.subr.mxu0 %v99
    %330 = vmatpush1.msra.mxu0 %v98
    %331 = vmatprep.subr.mxu0 %v102
    %332 = vmatpush1.msra.mxu0 %v101
    %333 = vmatprep.subr.mxu0 %v105
    %334 = vmatpush1.msra.mxu0 %v104
    %335 = vmatprep.subr.mxu0 %v108
    %336 = vmatpush1.msra.mxu0 %v107
    %337 = vmatprep.subr.mxu0 0.0
    %338 = vmatpush1.msra.mxu0 0.0
    %339 = vmatprep.subr.mxu0 0.0
    %340 = vmatpush1.msra.mxu0 0.0
    %341 = vmatprep.subr.mxu0 0.0
    %342 = vmatpush1.msra.mxu0 0.0
    %343 = vmatprep.subr.mxu0 0.0
    %344 = vmatpush1.msra.mxu0 0.0
    %345 = vmatprep.subr.mxu0 0.0
    %346 = vmatpush1.msra.mxu0 0.0
    %347 = vmatprep.subr.mxu0 0.0
    %348 = vmatpush1.msra.mxu0 0.0
    %349 = vmatprep.subr.mxu0 0.0
    %350 = vmatpush1.msra.mxu0 0.0
    %351 = vmatprep.subr.mxu0 0.0
    %352 = vmatpush1.msra.mxu0 0.0
    %353 = vmatprep.subr.mxu0 0.0
    %354 = vmatpush1.msra.mxu0 0.0
    %355 = vmatprep.subr.mxu0 0.0
    %356 = vmatpush1.msra.mxu0 0.0
    %357 = vmatprep.subr.mxu0 0.0
    %358 = vmatpush1.msra.mxu0 0.0
    %359 = vmatprep.subr.mxu0 0.0
    %360 = vmatpush1.msra.mxu0 0.0
    %361 = vmatprep.subr.mxu0 0.0
    %362 = vmatpush1.msra.mxu0 0.0
    %363 = vmatprep.subr.mxu0 0.0
    %364 = vmatpush1.msra.mxu0 0.0
    %365 = vmatprep.subr.mxu0 0.0
    %366 = vmatpush1.msra.mxu0 0.0
    %367 = vmatprep.subr.mxu0 0.0
    %368 = vmatpush1.msra.mxu0 0.0
    %369 = vmatprep.mubr.f32.mxu0 0.0
    %370 = vmatmul.mubr.f32.gmra.mrb[0].mxu0 %v61
    %v371 = vpop.f32.mrb[0].mxu0
    %v372 = vadd.f32 0.0, %v371
    %v373 = vpop.f32.mrb[0].mxu0
    %v374 = vadd.f32 0.0, %v373
    %375 = vdwg.mxu0
    %376 = vmatprep.subr.mxu0 0.0
    %377 = vmatpush1.msra.mxu0 %v64
    %378 = vmatprep.subr.mxu0 0.0
    %379 = vmatpush1.msra.mxu0 %v67
    %380 = vmatprep.subr.mxu0 0.0
    %381 = vmatpush1.msra.mxu0 %v70
    %382 = vmatprep.subr.mxu0 0.0
    %383 = vmatpush1.msra.mxu0 %v73
    %384 = vmatprep.subr.mxu0 0.0
    %385 = vmatpush1.msra.mxu0 %v76
    %386 = vmatprep.subr.mxu0 0.0
    %387 = vmatpush1.msra.mxu0 %v79
    %388 = vmatprep.subr.mxu0 0.0
    %389 = vmatpush1.msra.mxu0 %v82
    %390 = vmatprep.subr.mxu0 0.0
    %391 = vmatpush1.msra.mxu0 %v85
    %392 = vmatprep.subr.mxu0 0.0
    %393 = vmatpush1.msra.mxu0 %v88
    %394 = vmatprep.subr.mxu0 0.0
    %395 = vmatpush1.msra.mxu0 %v91
    %396 = vmatprep.subr.mxu0 0.0
    %397 = vmatpush1.msra.mxu0 %v94
    %398 = vmatprep.subr.mxu0 0.0
    %399 = vmatpush1.msra.mxu0 %v97
    %400 = vmatprep.subr.mxu0 0.0
    %401 = vmatpush1.msra.mxu0 %v100
    %402 = vmatprep.subr.mxu0 0.0
    %403 = vmatpush1.msra.mxu0 %v103
    %404 = vmatprep.subr.mxu0 0.0
    %405 = vmatpush1.msra.mxu0 %v106
    %406 = vmatprep.subr.mxu0 0.0
    %407 = vmatpush1.msra.mxu0 %v109
    %408 = vmatprep.subr.mxu0 0.0
    %409 = vmatpush1.msra.mxu0 0.0
    %410 = vmatprep.subr.mxu0 0.0
    %411 = vmatpush1.msra.mxu0 0.0
    %412 = vmatprep.subr.mxu0 0.0
    %413 = vmatpush1.msra.mxu0 0.0
    %414 = vmatprep.subr.mxu0 0.0
    %415 = vmatpush1.msra.mxu0 0.0
    %416 = vmatprep.subr.mxu0 0.0
    %417 = vmatpush1.msra.mxu0 0.0
    %418 = vmatprep.subr.mxu0 0.0
    %419 = vmatpush1.msra.mxu0 0.0
    %420 = vmatprep.subr.mxu0 0.0
    %421 = vmatpush1.msra.mxu0 0.0
    %422 = vmatprep.subr.mxu0 0.0
    %423 = vmatpush1.msra.mxu0 0.0
    %424 = vmatprep.subr.mxu0 0.0
    %425 = vmatpush1.msra.mxu0 0.0
    %426 = vmatprep.subr.mxu0 0.0
    %427 = vmatpush1.msra.mxu0 0.0
    %428 = vmatprep.subr.mxu0 0.0
    %429 = vmatpush1.msra.mxu0 0.0
    %430 = vmatprep.subr.mxu0 0.0
    %431 = vmatpush1.msra.mxu0 0.0
    %432 = vmatprep.subr.mxu0 0.0
    %433 = vmatpush1.msra.mxu0 0.0
    %434 = vmatprep.subr.mxu0 0.0
    %435 = vmatpush1.msra.mxu0 0.0
    %436 = vmatprep.subr.mxu0 0.0
    %437 = vmatpush1.msra.mxu0 0.0
    %438 = vmatprep.subr.mxu0 0.0
    %439 = vmatpush1.msra.mxu0 0.0
    %440 = vmatprep.mubr.f32.mxu0 0.0
    %441 = vmatmul.mubr.f32.gmra.mrb[0].mxu0 %v61
    %v442 = vpop.f32.mrb[0].mxu0
    %v443 = vadd.f32 0.0, %v442
    %v444 = vpop.f32.mrb[0].mxu0
    %445 = vdwg.mxu0
    %v446 = vrot.slane %v372, 4
    %v447 = vadd.f32 %v372, %v446
    %v448 = vrot.slane %v447, 2
    %v449 = vadd.f32 %v447, %v448
    %v450 = vrot.slane %v449, 1
    %v451 = vadd.f32 %v449, %v450
    %v452 = vrot.slane %v374, 4
    %v453 = vadd.f32 %v374, %v452
    %v454 = vrot.slane %v453, 2
    %v455 = vadd.f32 %v453, %v454
    %v456 = vrot.slane %v455, 1
    %v457 = vadd.f32 %v455, %v456
    %v458 = vrot.slane %v443, 4
    %v459 = vadd.f32 %v443, %v458
    %v460 = vrot.slane %v459, 2
    %v461 = vadd.f32 %v459, %v460
    %v462 = vrot.slane %v461, 1
    %v463 = vadd.f32 %v461, %v462
    %v464 = vrcp.pop 8.0
    %v465 = vmul.f32 %v451, %v464
    %v466 = vmul.f32 %v457, %v464
    %v467 = vmul.f32 %v463, %v464
    %v468 = vmul.f32 %v372, %v372
    %v469 = vmul.f32 %v374, %v374
    %v470 = vmul.f32 %v443, %v443
    %v471 = vrot.slane %v468, 4
    %v472 = vadd.f32 %v468, %v471
    %v473 = vrot.slane %v472, 2
    %v474 = vadd.f32 %v472, %v473
    %v475 = vrot.slane %v474, 1
    %v476 = vadd.f32 %v474, %v475
    %v477 = vrot.slane %v469, 4
    %v478 = vadd.f32 %v469, %v477
    %v479 = vrot.slane %v478, 2
    %v480 = vadd.f32 %v478, %v479
    %v481 = vrot.slane %v480, 1
    %v482 = vadd.f32 %v480, %v481
    %v483 = vrot.slane %v470, 4
    %v484 = vadd.f32 %v470, %v483
    %v485 = vrot.slane %v484, 2
    %v486 = vadd.f32 %v484, %v485
    %v487 = vrot.slane %v486, 1
    %v488 = vadd.f32 %v486, %v487
    %v489 = vmul.f32 %v476, %v464
    %v490 = vmul.f32 %v482, %v464
    %v491 = vmul.f32 %v488, %v464
    %v492 = vmul.f32 %v465, %v465
    %v493 = vmul.f32 %v466, %v466
    %v494 = vmul.f32 %v467, %v467
    %v495 = vsub.f32 %v489, %v492
    %v496 = vsub.f32 %v490, %v493
    %v497 = vsub.f32 %v491, %v494
    %v498 = vadd.f32 %v495, 1e-05
    %v499 = vadd.f32 %v496, 1e-05
    %v500 = vadd.f32 %v497, 1e-05
    %v501 = vrsqrt.pop %v498
    %v502 = vrsqrt.pop %v499
    %v503 = vrsqrt.pop %v500
    %v504 = vmul.f32 %v501, %v302
    %v505 = vmul.f32 %v502, %v303
    %v506 = vmul.f32 %v503, %v304
    %v507 = vlaneseq
    %v508 = vshrl.u32 %v507, 7
    %v509 = vsub.s32 0, %v508
    %v510 = vrot.slane %v504, %v509
    %v511 = vlaneseq
    %v512 = vshrl.u32 %v511, 7
    %v513 = vsub.s32 0, %v512
    %v514 = vrot.slane %v505, %v513
    %v515 = vlaneseq
    %v516 = vshrl.u32 %v515, 7
    %v517 = vsub.s32 0, %v516
    %v518 = vrot.slane %v506, %v517
    %v519 = vmul.f32 %v372, %v510
    %v520 = vmul.f32 %v374, %v514
    %v521 = vmul.f32 %v443, %v518
    %v522 = vmul.f32 %v465, %v504
    %v523 = vmul.f32 %v466, %v505
    %v524 = vmul.f32 %v467, %v506
    %v528 = vrot.slane %v522, 7
    %v529 = vrot.slane %v523, 7
    %v530 = vrot.slane %v524, 7
    %v534 = vsub.f32 %v302, %v528
    %v535 = vsub.f32 %v303, %v529
    %v536 = vsub.f32 %v304, %v530
    %v537 = vlaneseq
    %v538 = vshrl.u32 %v537, 7
    %v539 = vsub.s32 1, %v538
    %v540 = vrot.slane %v534, %v539
    %v541 = vlaneseq
    %v542 = vshrl.u32 %v541, 7
    %v543 = vsub.s32 1, %v542
    %v544 = vrot.slane %v535, %v543
    %v545 = vlaneseq
    %v546 = vshrl.u32 %v545, 7
    %v547 = vsub.s32 1, %v546
    %v548 = vrot.slane %v536, %v547
    %v549 = vadd.f32 %v519, %v540
    %v550 = vadd.f32 %v520, %v544
    %v551 = vadd.f32 %v521, %v548
    %v552 = vmax.f32 %v549, 0.0
    %v553 = vmax.f32 %v550, 0.0
    %v554 = vmax.f32 %v551, 0.0
    %555 = vmatprep.subr.mxu0 %v255
    %556 = vmatpush1.msra.mxu0 %v254
    %557 = vmatprep.subr.mxu0 %v258
    %558 = vmatpush1.msra.mxu0 %v257
    %559 = vmatprep.subr.mxu0 %v261
    %560 = vmatpush1.msra.mxu0 %v260
    %561 = vmatprep.subr.mxu0 %v264
    %562 = vmatpush1.msra.mxu0 %v263
    %563 = vmatprep.subr.mxu0 %v267
    %564 = vmatpush1.msra.mxu0 %v266
    %565 = vmatprep.subr.mxu0 %v270
    %566 = vmatpush1.msra.mxu0 %v269
    %567 = vmatprep.subr.mxu0 %v273
    %568 = vmatpush1.msra.mxu0 %v272
    %569 = vmatprep.subr.mxu0 %v276
    %570 = vmatpush1.msra.mxu0 %v275
    %571 = vmatprep.subr.mxu0 %v279
    %572 = vmatpush1.msra.mxu0 %v278
    %573 = vmatprep.subr.mxu0 %v282
    %574 = vmatpush1.msra.mxu0 %v281
    %575 = vmatprep.subr.mxu0 %v285
    %576 = vmatpush1.msra.mxu0 %v284
    %577 = vmatprep.subr.mxu0 %v288
    %578 = vmatpush1.msra.mxu0 %v287
    %579 = vmatprep.subr.mxu0 %v291
    %580 = vmatpush1.msra.mxu0 %v290
    %581 = vmatprep.subr.mxu0 %v294
    %582 = vmatpush1.msra.mxu0 %v293
    %583 = vmatprep.subr.mxu0 %v297
    %584 = vmatpush1.msra.mxu0 %v296
    %585 = vmatprep.subr.mxu0 %v300
    %586 = vmatpush1.msra.mxu0 %v299
    %587 = vmatprep.subr.mxu0 0.0
    %588 = vmatpush1.msra.mxu0 0.0
    %589 = vmatprep.subr.mxu0 0.0
    %590 = vmatpush1.msra.mxu0 0.0
    %591 = vmatprep.subr.mxu0 0.0
    %592 = vmatpush1.msra.mxu0 0.0
    %593 = vmatprep.subr.mxu0 0.0
    %594 = vmatpush1.msra.mxu0 0.0
    %595 = vmatprep.subr.mxu0 0.0
    %596 = vmatpush1.msra.mxu0 0.0
    %597 = vmatprep.subr.mxu0 0.0
    %598 = vmatpush1.msra.mxu0 0.0
    %599 = vmatprep.subr.mxu0 0.0
    %600 = vmatpush1.msra.mxu0 0.0
    %601 = vmatprep.subr.mxu0 0.0
    %602 = vmatpush1.msra.mxu0 0.0
    %603 = vmatprep.subr.mxu0 0.0
    %604 = vmatpush1.msra.mxu0 0.0
    %605 = vmatprep.subr.mxu0 0.0
    %606 = vmatpush1.msra.mxu0 0.0
    %607 = vmatprep.subr.mxu0 0.0
    %608 = vmatpush1.msra.mxu0 0.0
    %609 = vmatprep.subr.mxu0 0.0
    %610 = vmatpush1.msra.mxu0 0.0
    %611 = vmatprep.subr.mxu0 0.0
    %612 = vmatpush1.msra.mxu0 0.0
    %613 = vmatprep.subr.mxu0 0.0
    %614 = vmatpush1.msra.mxu0 0.0
    %615 = vmatprep.subr.mxu0 0.0
    %616 = vmatpush1.msra.mxu0 0.0
    %617 = vmatprep.subr.mxu0 0.0
    %618 = vmatpush1.msra.mxu0 0.0
    %619 = vmatprep.mubr.f32.mxu0 0.0
    %620 = vmatmul.mubr.f32.gmra.mrb[0].mxu0 %v61
    %v621 = vpop.f32.mrb[0].mxu0
    %v622 = vadd.f32 0.0, %v621
    %v623 = vpop.f32.mrb[0].mxu0
    %v624 = vadd.f32 0.0, %v623
    %625 = vdwg.mxu0
    %626 = vmatprep.subr.mxu0 0.0
    %627 = vmatpush1.msra.mxu0 %v256
    %628 = vmatprep.subr.mxu0 0.0
    %629 = vmatpush1.msra.mxu0 %v259
    %630 = vmatprep.subr.mxu0 0.0
    %631 = vmatpush1.msra.mxu0 %v262
    %632 = vmatprep.subr.mxu0 0.0
    %633 = vmatpush1.msra.mxu0 %v265
    %634 = vmatprep.subr.mxu0 0.0
    %635 = vmatpush1.msra.mxu0 %v268
    %636 = vmatprep.subr.mxu0 0.0
    %637 = vmatpush1.msra.mxu0 %v271
    %638 = vmatprep.subr.mxu0 0.0
    %639 = vmatpush1.msra.mxu0 %v274
    %640 = vmatprep.subr.mxu0 0.0
    %641 = vmatpush1.msra.mxu0 %v277
    %642 = vmatprep.subr.mxu0 0.0
    %643 = vmatpush1.msra.mxu0 %v280
    %644 = vmatprep.subr.mxu0 0.0
    %645 = vmatpush1.msra.mxu0 %v283
    %646 = vmatprep.subr.mxu0 0.0
    %647 = vmatpush1.msra.mxu0 %v286
    %648 = vmatprep.subr.mxu0 0.0
    %649 = vmatpush1.msra.mxu0 %v289
    %650 = vmatprep.subr.mxu0 0.0
    %651 = vmatpush1.msra.mxu0 %v292
    %652 = vmatprep.subr.mxu0 0.0
    %653 = vmatpush1.msra.mxu0 %v295
    %654 = vmatprep.subr.mxu0 0.0
    %655 = vmatpush1.msra.mxu0 %v298
    %656 = vmatprep.subr.mxu0 0.0
    %657 = vmatpush1.msra.mxu0 %v301
    %658 = vmatprep.subr.mxu0 0.0
    %659 = vmatpush1.msra.mxu0 0.0
    %660 = vmatprep.subr.mxu0 0.0
    %661 = vmatpush1.msra.mxu0 0.0
    %662 = vmatprep.subr.mxu0 0.0
    %663 = vmatpush1.msra.mxu0 0.0
    %664 = vmatprep.subr.mxu0 0.0
    %665 = vmatpush1.msra.mxu0 0.0
    %666 = vmatprep.subr.mxu0 0.0
    %667 = vmatpush1.msra.mxu0 0.0
    %668 = vmatprep.subr.mxu0 0.0
    %669 = vmatpush1.msra.mxu0 0.0
    %670 = vmatprep.subr.mxu0 0.0
    %671 = vmatpush1.msra.mxu0 0.0
    %672 = vmatprep.subr.mxu0 0.0
    %673 = vmatpush1.msra.mxu0 0.0
    %674 = vmatprep.subr.mxu0 0.0
    %675 = vmatpush1.msra.mxu0 0.0
    %676 = vmatprep.subr.mxu0 0.0
    %677 = vmatpush1.msra.mxu0 0.0
    %678 = vmatprep.subr.mxu0 0.0
    %679 = vmatpush1.msra.mxu0 0.0
    %680 = vmatprep.subr.mxu0 0.0
    %681 = vmatpush1.msra.mxu0 0.0
    %682 = vmatprep.subr.mxu0 0.0
    %683 = vmatpush1.msra.mxu0 0.0
    %684 = vmatprep.subr.mxu0 0.0
    %685 = vmatpush1.msra.mxu0 0.0
    %686 = vmatprep.subr.mxu0 0.0
    %687 = vmatpush1.msra.mxu0 0.0
    %688 = vmatprep.subr.mxu0 0.0
    %689 = vmatpush1.msra.mxu0 0.0
    %690 = vmatprep.mubr.f32.mxu0 0.0
    %691 = vmatmul.mubr.f32.gmra.mrb[0].mxu0 %v61
    %v692 = vpop.f32.mrb[0].mxu0
    %v693 = vadd.f32 0.0, %v692
    %v694 = vpop.f32.mrb[0].mxu0
    %695 = vdwg.mxu0
    %696 = vmatprep.subr.mxu0 %v111
    %697 = vmatpush1.msra.mxu0 %v110
    %698 = vmatprep.subr.mxu0 %v114
    %699 = vmatpush1.msra.mxu0 %v113
    %700 = vmatprep.subr.mxu0 %v117
    %701 = vmatpush1.msra.mxu0 %v116
    %702 = vmatprep.subr.mxu0 %v120
    %703 = vmatpush1.msra.mxu0 %v119
    %704 = vmatprep.subr.mxu0 %v123
    %705 = vmatpush1.msra.mxu0 %v122
    %706 = vmatprep.subr.mxu0 %v126
    %707 = vmatpush1.msra.mxu0 %v125
    %708 = vmatprep.subr.mxu0 %v129
    %709 = vmatpush1.msra.mxu0 %v128
    %710 = vmatprep.subr.mxu0 %v132
    %711 = vmatpush1.msra.mxu0 %v131
    %712 = vmatprep.subr.mxu0 %v135
    %713 = vmatpush1.msra.mxu0 %v134
    %714 = vmatprep.subr.mxu0 %v138
    %715 = vmatpush1.msra.mxu0 %v137
    %716 = vmatprep.subr.mxu0 %v141
    %717 = vmatpush1.msra.mxu0 %v140
    %718 = vmatprep.subr.mxu0 %v144
    %719 = vmatpush1.msra.mxu0 %v143
    %720 = vmatprep.subr.mxu0 %v147
    %721 = vmatpush1.msra.mxu0 %v146
    %722 = vmatprep.subr.mxu0 %v150
    %723 = vmatpush1.msra.mxu0 %v149
    %724 = vmatprep.subr.mxu0 %v153
    %725 = vmatpush1.msra.mxu0 %v152
    %726 = vmatprep.subr.mxu0 %v156
    %727 = vmatpush1.msra.mxu0 %v155
    %728 = vmatprep.subr.mxu0 %v159
    %729 = vmatpush1.msra.mxu0 %v158
    %730 = vmatprep.subr.mxu0 %v162
    %731 = vmatpush1.msra.mxu0 %v161
    %732 = vmatprep.subr.mxu0 %v165
    %733 = vmatpush1.msra.mxu0 %v164
    %734 = vmatprep.subr.mxu0 %v168
    %735 = vmatpush1.msra.mxu0 %v167
    %736 = vmatprep.subr.mxu0 %v171
    %737 = vmatpush1.msra.mxu0 %v170
    %738 = vmatprep.subr.mxu0 %v174
    %739 = vmatpush1.msra.mxu0 %v173
    %740 = vmatprep.subr.mxu0 %v177
    %741 = vmatpush1.msra.mxu0 %v176
    %742 = vmatprep.subr.mxu0 %v180
    %743 = vmatpush1.msra.mxu0 %v179
    %744 = vmatprep.subr.mxu0 %v183
    %745 = vmatpush1.msra.mxu0 %v182
    %746 = vmatprep.subr.mxu0 %v186
    %747 = vmatpush1.msra.mxu0 %v185
    %748 = vmatprep.subr.mxu0 %v189
    %749 = vmatpush1.msra.mxu0 %v188
    %750 = vmatprep.subr.mxu0 %v192
    %751 = vmatpush1.msra.mxu0 %v191
    %752 = vmatprep.subr.mxu0 %v195
    %753 = vmatpush1.msra.mxu0 %v194
    %754 = vmatprep.subr.mxu0 %v198
    %755 = vmatpush1.msra.mxu0 %v197
    %756 = vmatprep.subr.mxu0 %v201
    %757 = vmatpush1.msra.mxu0 %v200
    %758 = vmatprep.subr.mxu0 %v204
    %759 = vmatpush1.msra.mxu0 %v203
    %760 = vmatprep.mubr.f32.mxu0 %v553
    %761 = vmatmul.mubr.f32.gmra.mrb[0].mxu0 %v552
    %v762 = vpop.f32.mrb[0].mxu0
    %v763 = vadd.f32 %v622, %v762
    %v764 = vpop.f32.mrb[0].mxu0
    %v765 = vadd.f32 %v624, %v764
    %766 = vdwg.mxu0
    %767 = vmatprep.subr.mxu0 %v207
    %768 = vmatpush1.msra.mxu0 %v206
    %769 = vmatprep.subr.mxu0 %v210
    %770 = vmatpush1.msra.mxu0 %v209
    %771 = vmatprep.subr.mxu0 %v213
    %772 = vmatpush1.msra.mxu0 %v212
    %773 = vmatprep.subr.mxu0 %v216
    %774 = vmatpush1.msra.mxu0 %v215
    %775 = vmatprep.subr.mxu0 %v219
    %776 = vmatpush1.msra.mxu0 %v218
    %777 = vmatprep.subr.mxu0 %v222
    %778 = vmatpush1.msra.mxu0 %v221
    %779 = vmatprep.subr.mxu0 %v225
    %780 = vmatpush1.msra.mxu0 %v224
    %781 = vmatprep.subr.mxu0 %v228
    %782 = vmatpush1.msra.mxu0 %v227
    %783 = vmatprep.subr.mxu0 %v231
    %784 = vmatpush1.msra.mxu0 %v230
    %785 = vmatprep.subr.mxu0 %v234
    %786 = vmatpush1.msra.mxu0 %v233
    %787 = vmatprep.subr.mxu0 %v237
    %788 = vmatpush1.msra.mxu0 %v236
    %789 = vmatprep.subr.mxu0 %v240
    %790 = vmatpush1.msra.mxu0 %v239
    %791 = vmatprep.subr.mxu0 %v243
    %792 = vmatpush1.msra.mxu0 %v242
    %793 = vmatprep.subr.mxu0 %v246
    %794 = vmatpush1.msra.mxu0 %v245
    %795 = vmatprep.subr.mxu0 %v249
    %796 = vmatpush1.msra.mxu0 %v248
    %797 = vmatprep.subr.mxu0 %v252
    %798 = vmatpush1.msra.mxu0 %v251
    %799 = vmatprep.subr.mxu0 0.0
    %800 = vmatpush1.msra.mxu0 0.0
    %801 = vmatprep.subr.mxu0 0.0
    %802 = vmatpush1.msra.mxu0 0.0
    %803 = vmatprep.subr.mxu0 0.0
    %804 = vmatpush1.msra.mxu0 0.0
    %805 = vmatprep.subr.mxu0 0.0
    %806 = vmatpush1.msra.mxu0 0.0
    %807 = vmatprep.subr.mxu0 0.0
    %808 = vmatpush1.msra.mxu0 0.0
    %809 = vmatprep.subr.mxu0 0.0
    %810 = vmatpush1.msra.mxu0 0.0
    %811 = vmatprep.subr.mxu0 0.0
    %812 = vmatpush1.msra.mxu0 0.0
    %813 = vmatprep.subr.mxu0 0.0
    %814 = vmatpush1.msra.mxu0 0.0
    %815 = vmatprep.subr.mxu0 0.0
    %816 = vmatpush1.msra.mxu0 0.0
    %817 = vmatprep.subr.mxu0 0.0
    %818 = vmatpush1.msra.mxu0 0.0
    %819 = vmatprep.subr.mxu0 0.0
    %820 = vmatpush1.msra.mxu0 0.0
    %821 = vmatprep.subr.mxu0 0.0
    %822 = vmatpush1.msra.mxu0 0.0
    %823 = vmatprep.subr.mxu0 0.0
    %824 = vmatpush1.msra.mxu0 0.0
    %825 = vmatprep.subr.mxu0 0.0
    %826 = vmatpush1.msra.mxu0 0.0
    %827 = vmatprep.subr.mxu0 0.0
    %828 = vmatpush1.msra.mxu0 0.0
    %829 = vmatprep.subr.mxu0 0.0
    %830 = vmatpush1.msra.mxu0 0.0
    %831 = vmatprep.mubr.f32.mxu0 0.0
    %832 = vmatmul.mubr.f32.gmra.mrb[0].mxu0 %v554
    %v833 = vpop.f32.mrb[0].mxu0
    %v834 = vadd.f32 %v763, %v833
    %v835 = vpop.f32.mrb[0].mxu0
    %v836 = vadd.f32 %v765, %v835
    %837 = vdwg.mxu0
    %838 = vmatprep.subr.mxu0 0.0
    %839 = vmatpush1.msra.mxu0 %v112
    %840 = vmatprep.subr.mxu0 0.0
    %841 = vmatpush1.msra.mxu0 %v115
    %842 = vmatprep.subr.mxu0 0.0
    %843 = vmatpush1.msra.mxu0 %v118
    %844 = vmatprep.subr.mxu0 0.0
    %845 = vmatpush1.msra.mxu0 %v121
    %846 = vmatprep.subr.mxu0 0.0
    %847 = vmatpush1.msra.mxu0 %v124
    %848 = vmatprep.subr.mxu0 0.0
    %849 = vmatpush1.msra.mxu0 %v127
    %850 = vmatprep.subr.mxu0 0.0
    %851 = vmatpush1.msra.mxu0 %v130
    %852 = vmatprep.subr.mxu0 0.0
    %853 = vmatpush1.msra.mxu0 %v133
    %854 = vmatprep.subr.mxu0 0.0
    %855 = vmatpush1.msra.mxu0 %v136
    %856 = vmatprep.subr.mxu0 0.0
    %857 = vmatpush1.msra.mxu0 %v139
    %858 = vmatprep.subr.mxu0 0.0
    %859 = vmatpush1.msra.mxu0 %v142
    %860 = vmatprep.subr.mxu0 0.0
    %861 = vmatpush1.msra.mxu0 %v145
    %862 = vmatprep.subr.mxu0 0.0
    %863 = vmatpush1.msra.mxu0 %v148
    %864 = vmatprep.subr.mxu0 0.0
    %865 = vmatpush1.msra.mxu0 %v151
    %866 = vmatprep.subr.mxu0 0.0
    %867 = vmatpush1.msra.mxu0 %v154
    %868 = vmatprep.subr.mxu0 0.0
    %869 = vmatpush1.msra.mxu0 %v157
    %870 = vmatprep.subr.mxu0 0.0
    %871 = vmatpush1.msra.mxu0 %v160
    %872 = vmatprep.subr.mxu0 0.0
    %873 = vmatpush1.msra.mxu0 %v163
    %874 = vmatprep.subr.mxu0 0.0
    %875 = vmatpush1.msra.mxu0 %v166
    %876 = vmatprep.subr.mxu0 0.0
    %877 = vmatpush1.msra.mxu0 %v169
    %878 = vmatprep.subr.mxu0 0.0
    %879 = vmatpush1.msra.mxu0 %v172
    %880 = vmatprep.subr.mxu0 0.0
    %881 = vmatpush1.msra.mxu0 %v175
    %882 = vmatprep.subr.mxu0 0.0
    %883 = vmatpush1.msra.mxu0 %v178
    %884 = vmatprep.subr.mxu0 0.0
    %885 = vmatpush1.msra.mxu0 %v181
    %886 = vmatprep.subr.mxu0 0.0
    %887 = vmatpush1.msra.mxu0 %v184
    %888 = vmatprep.subr.mxu0 0.0
    %889 = vmatpush1.msra.mxu0 %v187
    %890 = vmatprep.subr.mxu0 0.0
    %891 = vmatpush1.msra.mxu0 %v190
    %892 = vmatprep.subr.mxu0 0.0
    %893 = vmatpush1.msra.mxu0 %v193
    %894 = vmatprep.subr.mxu0 0.0
    %895 = vmatpush1.msra.mxu0 %v196
    %896 = vmatprep.subr.mxu0 0.0
    %897 = vmatpush1.msra.mxu0 %v199
    %898 = vmatprep.subr.mxu0 0.0
    %899 = vmatpush1.msra.mxu0 %v202
    %900 = vmatprep.subr.mxu0 0.0
    %901 = vmatpush1.msra.mxu0 %v205
    %902 = vmatprep.mubr.f32.mxu0 %v553
    %903 = vmatmul.mubr.f32.gmra.mrb[0].mxu0 %v552
    %v904 = vpop.f32.mrb[0].mxu0
    %v905 = vadd.f32 %v693, %v904
    %v906 = vpop.f32.mrb[0].mxu0
    %907 = vdwg.mxu0
    %908 = vmatprep.subr.mxu0 0.0
    %909 = vmatpush1.msra.mxu0 %v208
    %910 = vmatprep.subr.mxu0 0.0
    %911 = vmatpush1.msra.mxu0 %v211
    %912 = vmatprep.subr.mxu0 0.0
    %913 = vmatpush1.msra.mxu0 %v214
    %914 = vmatprep.subr.mxu0 0.0
    %915 = vmatpush1.msra.mxu0 %v217
    %916 = vmatprep.subr.mxu0 0.0
    %917 = vmatpush1.msra.mxu0 %v220
    %918 = vmatprep.subr.mxu0 0.0
    %919 = vmatpush1.msra.mxu0 %v223
    %920 = vmatprep.subr.mxu0 0.0
    %921 = vmatpush1.msra.mxu0 %v226
    %922 = vmatprep.subr.mxu0 0.0
    %923 = vmatpush1.msra.mxu0 %v229
    %924 = vmatprep.subr.mxu0 0.0
    %925 = vmatpush1.msra.mxu0 %v232
    %926 = vmatprep.subr.mxu0 0.0
    %927 = vmatpush1.msra.mxu0 %v235
    %928 = vmatprep.subr.mxu0 0.0
    %929 = vmatpush1.msra.mxu0 %v238
    %930 = vmatprep.subr.mxu0 0.0
    %931 = vmatpush1.msra.mxu0 %v241
    %932 = vmatprep.subr.mxu0 0.0
    %933 = vmatpush1.msra.mxu0 %v244
    %934 = vmatprep.subr.mxu0 0.0
    %935 = vmatpush1.msra.mxu0 %v247
    %936 = vmatprep.subr.mxu0 0.0
    %937 = vmatpush1.msra.mxu0 %v250
    %938 = vmatprep.subr.mxu0 0.0
    %939 = vmatpush1.msra.mxu0 %v253
    %940 = vmatprep.subr.mxu0 0.0
    %941 = vmatpush1.msra.mxu0 0.0
    %942 = vmatprep.subr.mxu0 0.0
    %943 = vmatpush1.msra.mxu0 0.0
    %944 = vmatprep.subr.mxu0 0.0
    %945 = vmatpush1.msra.mxu0 0.0
    %946 = vmatprep.subr.mxu0 0.0
    %947 = vmatpush1.msra.mxu0 0.0
    %948 = vmatprep.subr.mxu0 0.0
    %949 = vmatpush1.msra.mxu0 0.0
    %950 = vmatprep.subr.mxu0 0.0
    %951 = vmatpush1.msra.mxu0 0.0
    %952 = vmatprep.subr.mxu0 0.0
    %953 = vmatpush1.msra.mxu0 0.0
    %954 = vmatprep.subr.mxu0 0.0
    %955 = vmatpush1.msra.mxu0 0.0
    %956 = vmatprep.subr.mxu0 0.0
    %957 = vmatpush1.msra.mxu0 0.0
    %958 = vmatprep.subr.mxu0 0.0
    %959 = vmatpush1.msra.mxu0 0.0
    %960 = vmatprep.subr.mxu0 0.0
    %961 = vmatpush1.msra.mxu0 0.0
    %962 = vmatprep.subr.mxu0 0.0
    %963 = vmatpush1.msra.mxu0 0.0
    %964 = vmatprep.subr.mxu0 0.0
    %965 = vmatpush1.msra.mxu0 0.0
    %966 = vmatprep.subr.mxu0 0.0
    %967 = vmatpush1.msra.mxu0 0.0
    %968 = vmatprep.subr.mxu0 0.0
    %969 = vmatpush1.msra.mxu0 0.0
    %970 = vmatprep.subr.mxu0 0.0
    %971 = vmatpush1.msra.mxu0 0.0
    %972 = vmatprep.mubr.f32.mxu0 0.0
    %973 = vmatmul.mubr.f32.gmra.mrb[0].mxu0 %v554
    %v974 = vpop.f32.mrb[0].mxu0
    %v975 = vadd.f32 %v905, %v974
    %v976 = vpop.f32.mrb[0].mxu0
    %977 = vdwg.mxu0
    %v978 = vrot.slane %v834, 4
    %v979 = vadd.f32 %v834, %v978
    %v980 = vrot.slane %v979, 2
    %v981 = vadd.f32 %v979, %v980
    %v982 = vrot.slane %v981, 1
    %v983 = vadd.f32 %v981, %v982
    %v984 = vrot.slane %v836, 4
    %v985 = vadd.f32 %v836, %v984
    %v986 = vrot.slane %v985, 2
    %v987 = vadd.f32 %v985, %v986
    %v988 = vrot.slane %v987, 1
    %v989 = vadd.f32 %v987, %v988
    %v990 = vrot.slane %v975, 4
    %v991 = vadd.f32 %v975, %v990
    %v992 = vrot.slane %v991, 2
    %v993 = vadd.f32 %v991, %v992
    %v994 = vrot.slane %v993, 1
    %v995 = vadd.f32 %v993, %v994
    %v996 = vmul.f32 %v983, %v464
    %v997 = vmul.f32 %v989, %v464
    %v998 = vmul.f32 %v995, %v464
    %v999 = vmul.f32 %v834, %v834
    %v1000 = vmul.f32 %v836, %v836
    %v1001 = vmul.f32 %v975, %v975
    %v1002 = vrot.slane %v999, 4
    %v1003 = vadd.f32 %v999, %v1002
    %v1004 = vrot.slane %v1003, 2
    %v1005 = vadd.f32 %v1003, %v1004
    %v1006 = vrot.slane %v1005, 1
    %v1007 = vadd.f32 %v1005, %v1006
    %v1008 = vrot.slane %v1000, 4
    %v1009 = vadd.f32 %v1000, %v1008
    %v1010 = vrot.slane %v1009, 2
    %v1011 = vadd.f32 %v1009, %v1010
    %v1012 = vrot.slane %v1011, 1
    %v1013 = vadd.f32 %v1011, %v1012
    %v1014 = vrot.slane %v1001, 4
    %v1015 = vadd.f32 %v1001, %v1014
    %v1016 = vrot.slane %v1015, 2
    %v1017 = vadd.f32 %v1015, %v1016
    %v1018 = vrot.slane %v1017, 1
    %v1019 = vadd.f32 %v1017, %v1018
    %v1020 = vmul.f32 %v1007, %v464
    %v1021 = vmul.f32 %v1013, %v464
    %v1022 = vmul.f32 %v1019, %v464
    %v1023 = vmul.f32 %v996, %v996
    %v1024 = vmul.f32 %v997, %v997
    %v1025 = vmul.f32 %v998, %v998
    %v1026 = vsub.f32 %v1020, %v1023
    %v1027 = vsub.f32 %v1021, %v1024
    %v1028 = vsub.f32 %v1022, %v1025
    %v1029 = vadd.f32 %v1026, 1e-05
    %v1030 = vadd.f32 %v1027, 1e-05
    %v1031 = vadd.f32 %v1028, 1e-05
    %v1032 = vrsqrt.pop %v1029
    %v1033 = vrsqrt.pop %v1030
    %v1034 = vrsqrt.pop %v1031
    %v1035 = vmul.f32 %v1032, %v302
    %v1036 = vmul.f32 %v1033, %v303
    %v1037 = vmul.f32 %v1034, %v304
    %v1038 = vlaneseq
    %v1039 = vshrl.u32 %v1038, 7
    %v1040 = vsub.s32 2, %v1039
    %v1041 = vrot.slane %v1035, %v1040
    %v1042 = vlaneseq
    %v1043 = vshrl.u32 %v1042, 7
    %v1044 = vsub.s32 2, %v1043
    %v1045 = vrot.slane %v1036, %v1044
    %v1046 = vlaneseq
    %v1047 = vshrl.u32 %v1046, 7
    %v1048 = vsub.s32 2, %v1047
    %v1049 = vrot.slane %v1037, %v1048
    %v1050 = vmul.f32 %v834, %v1041
    %v1051 = vmul.f32 %v836, %v1045
    %v1052 = vmul.f32 %v975, %v1049
    %v1053 = vmul.f32 %v996, %v1035
    %v1054 = vmul.f32 %v997, %v1036
    %v1055 = vmul.f32 %v998, %v1037
    %v1059 = vrot.slane %v1053, 7
    %v1060 = vrot.slane %v1054, 7
    %v1061 = vrot.slane %v1055, 7
    %v1065 = vsub.f32 %v302, %v1059
    %v1066 = vsub.f32 %v303, %v1060
    %v1067 = vsub.f32 %v304, %v1061
    %v1068 = vlaneseq
    %v1069 = vshrl.u32 %v1068, 7
    %v1070 = vsub.s32 3, %v1069
    %v1071 = vrot.slane %v1065, %v1070
    %v1072 = vlaneseq
    %v1073 = vshrl.u32 %v1072, 7
    %v1074 = vsub.s32 3, %v1073
    %v1075 = vrot.slane %v1066, %v1074
    %v1076 = vlaneseq
    %v1077 = vshrl.u32 %v1076, 7
    %v1078 = vsub.s32 3, %v1077
    %v1079 = vrot.slane %v1067, %v1078
    %v1080 = vadd.f32 %v1050, %v1071
    %v1081 = vadd.f32 %v1051, %v1075
    %v1082 = vadd.f32 %v1052, %v1079
    %v1083 = vmax.f32 %v1080, 0.0
    %v1084 = vmax.f32 %v1081, 0.0
    %v1085 = vmax.f32 %v1082, 0.0
    %v1086 = vlaneseq
    %v1087 = vshrl.u32 %v1086, 7
    %v1088 = vsub.s32 4, %v1087
    %v1089 = vrot.slane %v302, %v1088
    %v1090 = vlaneseq
    %v1091 = vshrl.u32 %v1090, 7
    %v1092 = vsub.s32 4, %v1091
    %v1093 = vrot.slane %v303, %v1092
    %v1094 = vlaneseq
    %v1095 = vshrl.u32 %v1094, 7
    %v1096 = vsub.s32 4, %v1095
    %v1097 = vrot.slane %v304, %v1096
    %v1098 = vmul.f32 %v1083, %v1089
    %v1099 = vmul.f32 %v1084, %v1093
    %v1100 = vmul.f32 %v1085, %v1097
    %v1101 = vadd.f32 %v1098, %v1099
    %v1102 = vadd.f32 %v1101, %v1100
    %1103 = vadd.xlane.f32.xlu0 %v1102
    %v1104 = vpop.xlane.xlu0 %1103
    %v1105 = vlaneseq
    %v1106 = vshrl.u32 %v1105, 7
    %v1107 = vsub.s32 5, %v1106
    %v1108 = vrot.slane %v302, %v1107
    %v1109 = vadd.f32 %v1104, %v1108
    %vm1110 = vcmask 7168
    %1111 = vst.msk [vmem:[%s5] sm:$0xff] %vm1110, %v1109
    // Predicated region
    $region34: #{critic_forward.1} parent=1 // pred_check
      _
    $region35: #{critic_forward.1} parent=1 // pred_check_branch
      %1113 = sbr.rel (0) target = $region37
    $region36: #{critic_forward.1} parent=1 // pred_region
      _
    $region37: #{critic_forward.1} parent=1 // pred_fallthru
      _
    // Predicated region
    $region38: #{critic_forward.1} parent=1 // pred_check
      _
    $region39: #{critic_forward.1} parent=1 // pred_check_branch
      %1115 = sbr.rel (0) target = $region41
    $region40: #{critic_forward.1} parent=1 // pred_region
      _
    $region41: #{critic_forward.1} parent=1 // pred_fallthru
      _
    %1116 = vsyncpa [#allocation3], 1
    %1117 = vsyncpa [#allocation5], 1

</llo_original>
